<compile_context>
chip_gen: v7x
topology: tpu7x:2x2x1
jax: 0.10.0
libtpu: 0.0.40
codegen_flags: <defaults>
</compile_context>

<pallas_src>
import functools

import jax
import jax.numpy as jnp
from jax.experimental import pallas as pl
from jax.experimental.pallas import tpu as pltpu


_DEFAULT_VMEM_CAP = 64 << 20      # assume the smallest (v7x per-TC) if query fails
_MAX_INPUT_VMEM = 16 << 20        # total for 2 inputs x 2 pipeline buffers
_MAX_VMEM_LIMIT = 32 << 20        # explicit scoped-VMEM request (safe on v5e..v7x)


def _tpu_info_safe():
    try:
        return pltpu.get_tpu_info()
    except Exception:
        return None


def _vmem_budget():
    """Returns (total bytes for 2 inputs x 2 buffers, vmem_limit_bytes)."""
    info = _tpu_info_safe()
    cap = getattr(info, "vmem_capacity_bytes", None) if info is not None else None
    if not isinstance(cap, int) or cap <= 0:
        cap = _DEFAULT_VMEM_CAP
    input_budget = min(cap // 4, _MAX_INPUT_VMEM)
    vmem_limit = min(cap // 2, _MAX_VMEM_LIMIT)
    return int(input_budget), int(vmem_limit)


def _num_tensorcores():
    """Best-effort TensorCore count; a wrong guess only changes the grid split
    (semantically neutral), never correctness."""
    info = _tpu_info_safe()
    if info is None:
        return 1
    for attr in ("num_tensorcores", "tensorcore_count", "num_cores", "core_count"):
        v = getattr(info, attr, None)
        if isinstance(v, int) and v >= 1:
            return v
    cap = getattr(info, "vmem_capacity_bytes", None)
    if isinstance(cap, int) and 0 < cap <= (64 << 20):
        return 2   # v7x-class chip: 64 MiB VMEM per TC, 2 TCs per chip
    return 1


def _native_sublanes(itemsize):
    # f32 -> 8, bf16/f16 -> 16, int8/fp8 -> 32 (native (sub, 128) tiling).
    return {4: 8, 2: 16, 1: 32}.get(int(itemsize), 8)


def _pick_tile_rows(n, row_bytes, sub, per_buf_budget, max_tile_rows):
    rows_fit = max(per_buf_budget // max(row_bytes, 1), 1)
    cap = n if max_tile_rows is None else max(int(max_tile_rows), 1)
    tile = min(n, rows_fit, cap)
    if tile >= n:
        return n                                # one full-rows block (any size ok)
    tile = max((tile // sub) * sub, sub)
    tile = min(tile, n)
    if tile < n and n % tile:
        # Prefer a divisor of n (no masked remainder) if one exists that is
        # not much smaller than the budget-derived tile.
        k = tile
        while k >= sub and k * 2 > tile:
            if n % k == 0 and k % sub == 0:
                return k
            k -= sub
    return tile


# ----------------------------------------------------------------------------
# Pallas kernel: per-tile partial sum, accumulated in a VMEM f32 scalar;
# SMEM output written once on the last grid step of each split.
# ----------------------------------------------------------------------------
def _pair_sum_kernel(t_ref, s_ref, o_ref, acc_ref, *, mode, tile_rows,
                     tiles_per_split, valid_rows, mask_rows):
    c = pl.program_id(0)
    i = pl.program_id(1)

    @pl.when(i == 0)
    def _():
        acc_ref[...] = jnp.zeros_like(acc_ref)

    t = t_ref[...].astype(jnp.float32)
    s = s_ref[...].astype(jnp.float32)

    row0 = (c * tiles_per_split + i) * tile_rows if mask_rows else None

    if mode in ("mse", "mae"):
        diff = s - t
        if mask_rows:
            rows = row0 + jax.lax.broadcasted_iota(jnp.int32, diff.shape, 0)
            diff = jnp.where(rows < valid_rows, diff, 0.0)
        part = jnp.sum(diff * diff) if mode == "mse" else jnp.sum(jnp.abs(diff))
    elif mode == "cos":
        # cos = dot / (max(||s||, eps) * max(||t||, eps)), eps = 1e-8, dim=1,
        # evaluated with a single EUP rsqrt:
        #   max(||s||,eps) * max(||t||,eps) == sqrt(max(ss,eps^2) * max(tt,eps^2))
        # TODO(synk): if a bundle dump ever shows the XLU lane-reductions
        # binding (small D), offload dot/ss/tt to the idle MXU via ones-vector
        # matmuls; left on the XLU since it is hidden under the DMA here.
        eps2 = jnp.float32(1e-16)
        dot = jnp.sum(s * t, axis=1, keepdims=True)
        ss = jnp.sum(s * s, axis=1, keepdims=True)
        tt = jnp.sum(t * t, axis=1, keepdims=True)
        cos = dot * jax.lax.rsqrt(jnp.maximum(ss, eps2) * jnp.maximum(tt, eps2))
        if mask_rows:
            rows = row0 + jax.lax.broadcasted_iota(jnp.int32, cos.shape, 0)
            cos = jnp.where(rows < valid_rows, cos, 0.0)
        part = jnp.sum(cos)
    else:
        raise NotImplementedError(f"Unknown distillation loss: {mode}!")

    acc_ref[...] = acc_ref[...] + part          # VMEM f32 accumulator (VPU only)

    @pl.when(i == tiles_per_split - 1)
    def _():
        o_ref[0, 0] = acc_ref[0, 0]             # single SMEM write per split


def _pallas_pair_sum(t, s, mode, max_tile_rows=None):
    """Sum-reduction over an [N, D] (teacher, student) pair.

    mse/mae: sum of squared / absolute differences over all elements.
    cos:     sum over rows of cosine similarity along the last axis.
    Operates on the natural layout (block last dim = full D); the row
    remainder of the last tile is masked inside the kernel.
    """
    assert t.shape == s.shape and t.ndim == 2
    n, d = t.shape
    itemsize = max(jnp.dtype(t.dtype).itemsize, jnp.dtype(s.dtype).itemsize)
    sub = _native_sublanes(itemsize)

    input_budget, vmem_limit = _vmem_budget()
    per_buf = max(input_budget // 4, 1)          # 2 inputs x 2 pipeline buffers
    row_bytes = d * itemsize
    tile_rows = _pick_tile_rows(n, row_bytes, sub, per_buf, max_tile_rows)

    total_tiles = -(-n // tile_rows)
    num_splits = 1
    if total_tiles >= 4 and total_tiles % 2 == 0 and _num_tensorcores() >= 2:
        num_splits = 2                           # shard rows across the 2 TCs (v7x)
    tiles_per_split = total_tiles // num_splits
    mask_rows = total_tiles * tile_rows != n

    # Explicit scoped-VMEM request; make sure it covers the chosen tiles.
    vmem_limit = max(vmem_limit, 4 * tile_rows * row_bytes + (2 << 20))

    def in_map(c, i):
        return (c * tiles_per_split + i, 0)

    kernel = functools.partial(
        _pair_sum_kernel, mode=mode, tile_rows=tile_rows,
        tiles_per_split=tiles_per_split, valid_rows=n, mask_rows=mask_rows)

    partials = pl.pallas_call(
        kernel,
        out_shape=jax.ShapeDtypeStruct((num_splits, 1), jnp.float32),
        grid_spec=pltpu.PrefetchScalarGridSpec(
            num_scalar_prefetch=0,
            grid=(num_splits, tiles_per_split),
            in_specs=[
                pl.BlockSpec((tile_rows, d), in_map),
                pl.BlockSpec((tile_rows, d), in_map),
            ],
            out_specs=pl.BlockSpec((1, 1), lambda c, i: (c, 0),
                                   memory_space=pltpu.MemorySpace.SMEM),
            scratch_shapes=[pltpu.VMEM((1, 1), jnp.float32)],
        ),
        compiler_params=pltpu.CompilerParams(
            dimension_semantics=("parallel", "arbitrary"),
            vmem_limit_bytes=int(vmem_limit)),
    )(t, s)
    return jnp.sum(partials)


# ----------------------------------------------------------------------------
# Plain-jnp partial sum (small-problem fallback)
# ----------------------------------------------------------------------------
def _jnp_pair_sum(t, s, mode):
    t = t.astype(jnp.float32)
    s = s.astype(jnp.float32)
    if mode == "mse":
        return jnp.sum((s - t) ** 2)
    if mode == "mae":
        return jnp.sum(jnp.abs(s - t))
    if mode == "cos":
        eps = jnp.float32(1e-8)
        dot = jnp.sum(s * t, axis=1)
        ns = jnp.sqrt(jnp.sum(s * s, axis=1))
        nt = jnp.sqrt(jnp.sum(t * t, axis=1))
        return jnp.sum(dot / (jnp.maximum(ns, eps) * jnp.maximum(nt, eps)))
    raise NotImplementedError(f"Unknown distillation loss: {mode}!")


# ----------------------------------------------------------------------------
# Module-equivalent wrapper
# ----------------------------------------------------------------------------
class DistillationLoss:
    """JAX/Pallas forward-pass equivalent of semilearn DistillationLoss."""

    def __init__(self, type, min_pallas_elems=1 << 18, max_tile_rows=None):
        if type not in ("none", "mse", "mae", "cos"):
            raise NotImplementedError(f"Unknown distillation loss: {type}!")
        self.type = type
        # Below this element count custom-call dispatch dominates; a fused XLA
        # reduction is strictly faster.  Set to 0 to force the Pallas path.
        self.min_pallas_elems = min_pallas_elems
        # Test/tuning hook: caps the row tile (forces the multi-tile + masked
        # remainder path even at small shapes).
        self.max_tile_rows = max_tile_rows

    def __call__(self, teacher_feat_lb, teacher_feat_ulb,
                 student_feat_lb, student_feat_ulb):
        if self.type == "none":
            # Matches torch.zeros(1, dtype=student_feat_lb.dtype).
            return jnp.zeros((1,), dtype=student_feat_lb.dtype)

        out_dtype = jnp.result_type(student_feat_lb.dtype, teacher_feat_lb.dtype)
        teacher_feat_lb = jax.lax.stop_gradient(teacher_feat_lb)
        teacher_feat_ulb = jax.lax.stop_gradient(teacher_feat_ulb)

        # The loss is a pure sum reduction, so the labeled / unlabeled pairs
        # are reduced separately (no jnp.concatenate => no extra HBM pass) and
        # the partial sums are combined here.
        # TODO(synk): could fuse both pairs into a single pallas_call (halves
        # dispatch cost) when the per-call time is only tens of microseconds.
        pairs = ((teacher_feat_lb, student_feat_lb),
                 (teacher_feat_ulb, student_feat_ulb))
        total_elems = sum(int(t.size) for t, _ in pairs)
        total_rows = sum(int(t.shape[0]) for t, _ in pairs)

        use_pallas = total_elems >= self.min_pallas_elems
        partial = jnp.float32(0.0)
        for t, s in pairs:
            if self.type in ("mse", "mae") and t.ndim != 2:
                # Order-free reductions: collapse trailing dims.
                t = t.reshape(t.shape[0], -1)
                s = s.reshape(s.shape[0], -1)
            if use_pallas and t.ndim == 2:
                partial = partial + _pallas_pair_sum(
                    t, s, self.type, max_tile_rows=self.max_tile_rows)
            else:
                partial = partial + _jnp_pair_sum(t, s, self.type)

        if self.type == "cos":
            loss = -partial / jnp.float32(total_rows)    # -mean(cosine_similarity)
        else:
            loss = partial / jnp.float32(total_elems)    # mean over all elements
        return loss.astype(out_dtype)


# ----------------------------------------------------------------------------
# Pure-JAX reference (faithful to the module: concat then reduce)
# ----------------------------------------------------------------------------
def _reference(teacher_lb, teacher_ulb, student_lb, student_ulb, mode):
    if mode == "none":
        return jnp.zeros((1,), dtype=student_lb.dtype)
    t = jnp.concatenate((teacher_lb, teacher_ulb), axis=0).astype(jnp.float32)
    s = jnp.concatenate((student_lb, student_ulb), axis=0).astype(jnp.float32)
    if mode == "mse":
        return jnp.mean((s - t) ** 2)
    if mode == "mae":
        return jnp.mean(jnp.abs(s - t))
    eps = 1e-8
    dot = jnp.sum(s * t, axis=1)
    ns = jnp.sqrt(jnp.sum(s * s, axis=1))
    nt = jnp.sqrt(jnp.sum(t * t, axis=1))
    return -jnp.mean(dot / (jnp.maximum(ns, eps) * jnp.maximum(nt, eps)))


# ----------------------------------------------------------------------------
# Main
# ----------------------------------------------------------------------------
def _check(name, out, ref, atol=1e-4, rtol=1e-4):
    good = bool(jnp.allclose(jnp.ravel(out), jnp.ravel(ref), atol=atol, rtol=rtol))
    if not good:
        print(f"MISMATCH {name}: got={out} ref={ref}")
    return good


if __name__ == "__main__":
    key = jax.random.PRNGKey(0)
    keys = jax.random.split(key, 8)
    ok = True

    # Config 1: tiny module-consistent shapes ([batch, hidden] features).
    B_LB, B_ULB, D = 2, 2, 32
    tlb = jax.random.normal(keys[0], (B_LB, D), dtype=jnp.float32)
    tulb = jax.random.normal(keys[1], (B_ULB, D), dtype=jnp.float32)
    slb = jax.random.normal(keys[2], (B_LB, D), dtype=jnp.float32)
    sulb = jax.random.normal(keys[3], (B_ULB, D), dtype=jnp.float32)

    for mode in ("none", "mse", "mae", "cos"):
        ref = jax.block_until_ready(_reference(tlb, tulb, slb, sulb, mode))
        out_pallas = jax.block_until_ready(
            DistillationLoss(mode, min_pallas_elems=0)(tlb, tulb, slb, sulb))
        out_default = jax.block_until_ready(
            DistillationLoss(mode)(tlb, tulb, slb, sulb))
        ok &= _check(f"cfg1/{mode}/pallas", out_pallas, ref)
        ok &= _check(f"cfg1/{mode}/fallback", out_default, ref)

    # Config 2: non-divisible row counts with a forced small tile so the
    # multi-tile grid + in-kernel row-remainder masking path is exercised.
    B2_LB, B2_ULB, D2 = 20, 28, 96
    tlb2 = jax.random.normal(keys[4], (B2_LB, D2), dtype=jnp.float32)
    tulb2 = jax.random.normal(keys[5], (B2_ULB, D2), dtype=jnp.float32)
    slb2 = jax.random.normal(keys[6], (B2_LB, D2), dtype=jnp.float32)
    sulb2 = jax.random.normal(keys[7], (B2_ULB, D2), dtype=jnp.float32)

    for mode in ("mse", "mae", "cos"):
        ref = jax.block_until_ready(_reference(tlb2, tulb2, slb2, sulb2, mode))
        out_tiled = jax.block_until_ready(
            DistillationLoss(mode, min_pallas_elems=0, max_tile_rows=8)(
                tlb2, tulb2, slb2, sulb2))
        ok &= _check(f"cfg2/{mode}/pallas_tiled", out_tiled, ref)

    if ok:
        print("KERNEL_OK")
</pallas_src>

<mosaic_0001>
module attributes {stable_mosaic.version = 11 : i64} {
  func.func @_pair_sum_kernel(%arg0: i32, %arg1: i32, %arg2: memref<2x32xf32, #tpu.memory_space<vmem>>, %arg3: memref<2x32xf32, #tpu.memory_space<vmem>>, %arg4: memref<1x1xf32, #tpu.memory_space<smem>>, %arg5: memref<1x1xf32, #tpu.memory_space<vmem>>) attributes {dimension_semantics = [#tpu.dimension_semantics<parallel>, #tpu.dimension_semantics<arbitrary>], iteration_bounds = array<i64: 1, 1>, scalar_prefetch = 0 : i64, scratch_operands = 1 : i64, tpu.core_type = #tpu.core_type<tc>, window_params = [{transform_indices = @transform_0, window_bounds = array<i64: 2, 32>}, {transform_indices = @transform_1, window_bounds = array<i64: 2, 32>}, {transform_indices = @transform_2, window_bounds = array<i64: 1, 1>}]} {
    %c0_i32 = arith.constant 0 : i32
    %0 = arith.cmpi eq, %arg1, %c0_i32 : i32
    %1 = arith.extui %0 : i1 to i32
    %c0_i32_0 = arith.constant 0 : i32
    %2 = arith.cmpi ne, %1, %c0_i32_0 : i32
    scf.if %2 {
      %cst_10 = arith.constant 0.000000e+00 : f32
      %18 = vector.broadcast %cst_10 : f32 to vector<1x1xf32>
      %c0_11 = arith.constant 0 : index
      %c0_12 = arith.constant 0 : index
      %19 = vector.load %arg5[%c0_11, %c0_12] : memref<1x1xf32, #tpu.memory_space<vmem>>, vector<1x1xf32>
      tpu.vector_store %arg5[%c0_11, %c0_12], %18 {strides = array<i32>} : memref<1x1xf32, #tpu.memory_space<vmem>>, vector<1x1xf32>,
    } else {
    }
    %c0 = arith.constant 0 : index
    %c0_1 = arith.constant 0 : index
    %3 = vector.load %arg2[%c0, %c0_1] : memref<2x32xf32, #tpu.memory_space<vmem>>, vector<2x32xf32>
    %c0_2 = arith.constant 0 : index
    %c0_3 = arith.constant 0 : index
    %4 = vector.load %arg3[%c0_2, %c0_3] : memref<2x32xf32, #tpu.memory_space<vmem>>, vector<2x32xf32>
    %5 = arith.subf %4, %3 : vector<2x32xf32>
    %6 = arith.mulf %5, %5 : vector<2x32xf32>
    %7 = vector.shape_cast %6 : vector<2x32xf32> to vector<1x2x32xf32>
    %cst = arith.constant dense<0.000000e+00> : vector<1xf32>
    %8 = vector.multi_reduction <add>, %7, %cst [1, 2] : vector<1x2x32xf32> to vector<1xf32>
    %9 = vector.shape_cast %8 : vector<1xf32> to vector<1x1x1xf32>
    %10 = vector.extract %9[0, 0, 0] : f32 from vector<1x1x1xf32>
    %c0_4 = arith.constant 0 : index
    %c0_5 = arith.constant 0 : index
    %11 = vector.load %arg5[%c0_4, %c0_5] : memref<1x1xf32, #tpu.memory_space<vmem>>, vector<1x1xf32>
    %12 = vector.broadcast %10 : f32 to vector<1x1xf32>
    %13 = arith.addf %11, %12 : vector<1x1xf32>
    %c0_6 = arith.constant 0 : index
    %c0_7 = arith.constant 0 : index
    %14 = vector.load %arg5[%c0_6, %c0_7] : memref<1x1xf32, #tpu.memory_space<vmem>>, vector<1x1xf32>
    tpu.vector_store %arg5[%c0_6, %c0_7], %13 {strides = array<i32>} : memref<1x1xf32, #tpu.memory_space<vmem>>, vector<1x1xf32>,
    %c0_i32_8 = arith.constant 0 : i32
    %15 = arith.cmpi eq, %arg1, %c0_i32_8 : i32
    %16 = arith.extui %15 : i1 to i32
    %c0_i32_9 = arith.constant 0 : i32
    %17 = arith.cmpi ne, %16, %c0_i32_9 : i32
    scf.if %17 {
      %c0_10 = arith.constant 0 : index
      %c0_11 = arith.constant 0 : index
      %18 = vector.load %arg5[%c0_10, %c0_11] : memref<1x1xf32, #tpu.memory_space<vmem>>, vector<1x1xf32>
      %19 = vector.extract %18[0, 0] : f32 from vector<1x1xf32>
      %c0_12 = arith.constant 0 : index
      %c0_13 = arith.constant 0 : index
      %20 = memref.load %arg4[%c0_12, %c0_13] : memref<1x1xf32, #tpu.memory_space<smem>>
      memref.store %19, %arg4[%c0_12, %c0_13] : memref<1x1xf32, #tpu.memory_space<smem>>
    } else {
    }
    return
  }
  func.func @transform_0(%arg0: i32, %arg1: i32) -> (i32, i32) {
    %c1_i32 = arith.constant 1 : i32
    %0 = arith.muli %arg0, %c1_i32 : i32
    %1 = arith.addi %0, %arg1 : i32
    %c0_i32 = arith.constant 0 : i32
    %c0_i32_0 = arith.constant 0 : i32
    return %1, %c0_i32 : i32, i32
  }
  func.func @transform_1(%arg0: i32, %arg1: i32) -> (i32, i32) {
    %c1_i32 = arith.constant 1 : i32
    %0 = arith.muli %arg0, %c1_i32 : i32
    %1 = arith.addi %0, %arg1 : i32
    %c0_i32 = arith.constant 0 : i32
    %c0_i32_0 = arith.constant 0 : i32
    return %1, %c0_i32 : i32, i32
  }
  func.func @transform_2(%arg0: i32, %arg1: i32) -> (i32, i32) {
    %c0_i32 = arith.constant 0 : i32
    %c0_i32_0 = arith.constant 0 : i32
    return %arg0, %c0_i32 : i32, i32
  }
}

</mosaic_0001>

<llo_original>
// kernel: tpu_custom_call.1
$region0: #{tpu_custom_call.1}
  #allocation0 [shape = 'u32[]', space=smem, size = 0x4, offset = 0x4, fixed_abs, tag = 'smem constant byte address 0x4 - core index']
  #allocation1 [shape = 'u32[144,128]{1,0:T(1,128)}', space=vmem, size = 0x12000, scoped, tag = 'internal scratch']
  #allocation2 [shape = 'f32[1,1]{1,0:T(1,128)}', space=vmem, size = 0x200, scoped, tag = 'scratch operand']
  %s0 = inlined_call_operand.hbm [shape: f32[2,32], index: 0, kind: input, shape index: {}]
  %s1 = inlined_call_operand.vmem [shape: f32[2,32], index: 1, kind: input, shape index: {}]
  %s2 = inlined_call_operand.hbm [shape: f32[1,1], index: 2, kind: output, shape index: {}]
  %s3 = sld [smem:[#allocation0]]
  $region30: #{tpu_custom_call.1} parent=0
    _
  %s5 = ssub.s32 1, %s3
  %s6 = scalar_select 0, %s5, %s3
  $region1: #{tpu_custom_call.1} parent=0
    #allocation3 [shape = 'u8[1024]{0}', space=vmem, size = 0x400, scoped, tag = 'input window, operand 0, single buffered']
    #allocation4 [shape = 's32[1]{0}', space=sflag, size = 0x4, scoped, tag = 'scoped memory for tpu_custom_call.1']
    #allocation5 [shape = 's32[1]{0}', space=sflag, size = 0x4, scoped, tag = 'scoped memory for tpu_custom_call.1']
    #allocation6 [shape = 'u8[512]{0}', space=smem, size = 0x200, scoped, tag = 'output window, operand 0, single buffered']
    %7 = vsyncpa [#allocation4], 0
    %8 = vsyncpa [#allocation5], 0
    // Predicated region
    $region2: #{tpu_custom_call.1} parent=1 // pred_check
      _
    $region3: #{tpu_custom_call.1} parent=1 // pred_check_branch
      %10 = sbr.rel (0) target = $region5
    $region4: #{tpu_custom_call.1} parent=1 // pred_region
      %s11 = sadd.s32 0, 0
      %s13 = ssub.s32 32, 32
      %14 = vsyncadd [#allocation4], %s13
      %s15 = smul.addr %s11, 32
      %s16 = scalar_lea.hbm %s0, %s15
      %s18 = sshll.u32 [#allocation3], 4
      %s19 = int_to_ptr.vmem [resolvable:$true] %s18
      %21 = dma.hbm_to_vmem [thread:$0]  %s16, 32, %s19, [#allocation4]
    $region5: #{tpu_custom_call.1} parent=1 // pred_fallthru
      _
    // Predicated region
    $region6: #{tpu_custom_call.1} parent=1 // pred_check
      _
    $region7: #{tpu_custom_call.1} parent=1 // pred_check_branch
      %23 = sbr.rel (0) target = $region9
    $region8: #{tpu_custom_call.1} parent=1 // pred_region
      %s24 = sadd.s32 0, 0
      %p25 = scmp.lt.s32.totalorder %s24, 0
      %s26 = scalar_select %p25, %s24, 0
      %s27 = smul.addr %s26, 2
      %s28 = scalar_lea.vmem %s1, %s27
      %s29 = sadd.s32 0, 0
    $region9: #{tpu_custom_call.1} parent=1 // pred_fallthru
      _
    // Predicated region
    $region10: #{tpu_custom_call.1} parent=1 // pred_check
      _
    $region11: #{tpu_custom_call.1} parent=1 // pred_check_branch
      %31 = sbr.rel (0) target = $region13
    $region12: #{tpu_custom_call.1} parent=1 // pred_region
      %32 = dma.done [#allocation4], 32
    $region13: #{tpu_custom_call.1} parent=1 // pred_fallthru
      _
    %s33 = sadd.s32 0, 0
    %p34 = scmp.lt.s32.totalorder %s33, 0
    %s35 = scalar_select %p34, %s33, 0
    %s36 = smul.addr %s35, 2
    %s37 = scalar_lea.vmem %s1, %s36
    %s38 = sadd.s32 0, 0
    %s39 = sadd.s32 0, 0
    %p40 = scmp.lt.s32.totalorder %s39, 0
    %s41 = scalar_select %p40, %s39, 0
    %s42 = smul.addr %s41, 2
    %s43 = scalar_lea.vmem %s1, %s42
    %s44 = sadd.s32 0, 0
    %p45 = scmp.eq.s32.totalorder 0, 0
    // Predicated region
    $region14: #{tpu_custom_call.1} parent=1 // pred_check
      %p46 = pneg %p45
    $region15: #{tpu_custom_call.1} parent=1 // pred_check_branch
      %48 = sbr.rel (%p46) target = $region17
    $region16: #{tpu_custom_call.1} parent=1 // pred_region
      %vm49 = vcmask 0
      %50 = vst.msk [vmem:[#allocation2] sm:$0x1] %vm49, 0.0
    $region17: #{tpu_custom_call.1} parent=1 // pred_fallthru
      _
    %v51 = vld [vmem:[#allocation3] sm:$0x3]
    %v52 = vld [vmem:[%s43] sm:$0x3]
    %v53 = vsub.f32 %v52, %v51
    %v54 = vmul.f32 %v53, %v53
    %vm55 = vcmask 254976
    %v56 = vsel %vm55, %v54, 0.0
    %57 = vadd.xlane.f32.xlu0 %v56
    %v58 = vpop.xlane.xlu0 %57
    %v59 = vrot.slane %v58, 4
    %v60 = vadd.f32 %v58, %v59
    %v61 = vrot.slane %v60, 2
    %v62 = vadd.f32 %v60, %v61
    %v63 = vrot.slane %v62, 1
    %v64 = vadd.f32 %v62, %v63
    %s65 = vtos %v64
    %v66 = vld [vmem:[#allocation2] sm:$0x1]
    %v67 = vstv %s65
    %v68 = vadd.f32 %v66, %v67
    %vm69 = vcmask 0
    %70 = vst.msk [vmem:[#allocation2] sm:$0x1] %vm69, %v68
    // Predicated region
    $region18: #{tpu_custom_call.1} parent=1 // pred_check
      %p71 = pneg %p45
    $region19: #{tpu_custom_call.1} parent=1 // pred_check_branch
      %73 = sbr.rel (%p71) target = $region21
    $region20: #{tpu_custom_call.1} parent=1 // pred_region
      %v74 = vld [vmem:[#allocation2] sm:$0x1]
      %s75 = vtos %v74
      %s76 = scalar_lea.smem [#allocation6], 0
      %77 = sst [smem:[%s76]] %s75
    $region21: #{tpu_custom_call.1} parent=1 // pred_fallthru
      _
    // Predicated region
    $region22: #{tpu_custom_call.1} parent=1 // pred_check
      _
    $region23: #{tpu_custom_call.1} parent=1 // pred_check_branch
      %79 = sbr.rel (0) target = $region25
    $region24: #{tpu_custom_call.1} parent=1 // pred_region
      %s81 = ssub.s32 16, 16
      %82 = vsyncadd [#allocation5], %s81
      %85 = dma.smem_to_hbm [#allocation6], 16, %s2, [#allocation5]
    $region25: #{tpu_custom_call.1} parent=1 // pred_fallthru
      _
    // Predicated region
    $region26: #{tpu_custom_call.1} parent=1 // pred_check
      _
    $region27: #{tpu_custom_call.1} parent=1 // pred_check_branch
      %87 = sbr.rel (0) target = $region29
    $region28: #{tpu_custom_call.1} parent=1 // pred_region
      %88 = dma.done [#allocation5], 16
    $region29: #{tpu_custom_call.1} parent=1 // pred_fallthru
      _
    %89 = sfence
    %90 = vsyncpa [#allocation4], 1
    %91 = vsyncpa [#allocation5], 1

</llo_original>
